<compile_context>
chip_gen: v5e
topology: v5e:2x2
jax: 0.10.0
libtpu: 0.0.40
codegen_flags: <defaults>
</compile_context>

<pallas_src>
import functools
import math

import numpy as np
import jax
import jax.numpy as jnp
from jax.experimental import pallas as pl
from jax.experimental.pallas import tpu as pltpu

_MIB = 1024 * 1024


# ---------------------------------------------------------------------------
# Kernel
# ---------------------------------------------------------------------------

def _wselect_kernel(x_ref, c_ref, o_ref, *, rep):
    """W-direction one-hot select, with H replication folded into the layout.

    x_ref: (TB, W) block of flattened input rows.
    c_ref: (W, W_out) one-hot column-select matrix (resident).
    o_ref: (TB, rep * W_out) output block; each W-expanded row is written
           `rep` times side by side (integer H scale), rep == 1 otherwise.
    """
    xw = jnp.dot(
        x_ref[...], c_ref[...], preferred_element_type=jnp.float32
    ).astype(o_ref.dtype)
    if rep == 1:
        o_ref[...] = xw
    else:
        o_ref[...] = jnp.concatenate([xw] * rep, axis=-1)


# ---------------------------------------------------------------------------
# Host-side helpers
# ---------------------------------------------------------------------------

def _nearest_source_indices(in_size, out_size, scale):
    # PyTorch 'nearest' (scale_factor path), in float64 to avoid f32 drift.
    # TODO(synk): output-size-driven (in/out ratio) nearest would pick
    # different sources for some non-integer scales; this module always
    # passes scale_factor, so the scale_factor rule is used.
    inv = 1.0 / float(scale)
    idx = np.floor(np.arange(out_size, dtype=np.float64) * inv)
    return np.minimum(idx, in_size - 1).astype(np.int64)


def _device_vmem_bytes():
    """Physical VMEM of the current TPU generation (conservative fallback)."""
    try:
        if hasattr(pltpu, "get_tpu_info"):
            cap = getattr(pltpu.get_tpu_info(), "vmem_capacity_bytes", None)
            if cap:
                return int(cap)
    except Exception:
        pass
    return 64 * _MIB  # v7x per-TensorCore VMEM: safe lower bound everywhere


def _row_align(dtype):
    """Sublane row alignment: 8 for 4-byte, 16 for 2-byte, 32 for 1-byte."""
    itemsize = jnp.dtype(dtype).itemsize
    if itemsize >= 4:
        return 8
    if itemsize == 2:
        return 16
    return 32


def _pick_row_tile(nr, bytes_per_row, align, budget_bytes):
    """Largest aligned divisor of nr fitting the budget; prefer >= 2 steps."""
    if nr <= align:
        return nr
    cands = [d for d in range(align, nr + 1, align) if nr % d == 0]
    if not cands:
        return nr                     # full extent (always a legal block dim)
    fitting = [d for d in cands if d * bytes_per_row <= budget_bytes]
    if not fitting:
        return cands[0]
    best = fitting[-1]
    if best == nr:
        # Prefer >= 2 grid steps so v7x's two TensorCores both get work, but
        # never explode the step count (<= 8 steps; ~0.35us/step overhead).
        split = [d for d in fitting if d < nr and d * 8 >= nr]
        if split:
            best = split[-1]
    return best


# ---------------------------------------------------------------------------
# pallas_call wrapper
# ---------------------------------------------------------------------------

def _run_wselect(x2, c_mat, rep, w_dtype):
    """x2: (NR, W) rows -> (NR, rep * W_out) via one-hot W-select matmul."""
    NR, W = x2.shape
    W_out = c_mat.shape[1]
    itemsize = jnp.dtype(w_dtype).itemsize

    cap = _device_vmem_bytes()
    tile_budget = (3 * cap) // 8                  # ~48 MiB on 128-MiB chips,
    vmem_limit = max(16 * _MIB, (3 * cap) // 4)   # ~24/48 MiB on 64-MiB v7x
    vmem_limit = int(min(vmem_limit, cap))

    # Double-buffered streamed x rows + output rows per grid step; the small
    # resident one-hot C is reserved out of the budget up front.
    c_bytes = 2 * W * W_out * itemsize
    budget = max(tile_budget - c_bytes, 1 * _MIB)
    bytes_per_row = 2 * (W + rep * W_out) * itemsize
    align = _row_align(w_dtype)
    TB = _pick_row_tile(NR, bytes_per_row, align, budget)
    grid = (NR // TB,)

    cost = pl.CostEstimate(
        flops=2 * NR * W * W_out,
        transcendentals=0,
        bytes_accessed=(NR * W + NR * rep * W_out + W * W_out) * itemsize,
    )

    return pl.pallas_call(
        functools.partial(_wselect_kernel, rep=rep),
        out_shape=jax.ShapeDtypeStruct((NR, rep * W_out), w_dtype),
        grid=grid,
        in_specs=[
            # Streamed once: a tall block of flattened input rows.
            pl.BlockSpec((TB, W), lambda i: (i, 0)),
            # Resident one-hot column-select matrix (constant block index).
            pl.BlockSpec((W, W_out), lambda i: (0, 0)),
        ],
        out_specs=pl.BlockSpec((TB, rep * W_out), lambda i: (i, 0)),
        compiler_params=pltpu.CompilerParams(
            dimension_semantics=("parallel",),
            vmem_limit_bytes=vmem_limit,
        ),
        cost_estimate=cost,
    )(x2, c_mat)


def upsample_nearest(x, scale_factor):
    """x: (N, C, H, W) -> (N, C, floor(H*sh), floor(W*sw)), PyTorch-nearest."""
    N, C, H, W = x.shape
    if isinstance(scale_factor, (tuple, list)):
        sh, sw = float(scale_factor[0]), float(scale_factor[1])
    else:
        sh = sw = float(scale_factor)
    H_out = int(math.floor(H * sh))
    W_out = int(math.floor(W * sw))
    NC = N * C

    row_src = _nearest_source_indices(H, H_out, sh)          # (H_out,)
    col_src = _nearest_source_indices(W, W_out, sw)          # (W_out,)
    c_np = (np.arange(W)[:, None] == col_src[None, :])       # (W, W_out) one-hot

    orig_dtype = x.dtype
    if jnp.issubdtype(orig_dtype, jnp.floating):
        w_dtype = orig_dtype          # keep native dtype (bf16 one-hot exact)
    else:
        # TODO(synk): integer dtypes go through f32 (exact only for |x| <= 2**24).
        w_dtype = jnp.float32
    xw = x.astype(w_dtype)
    c_mat = jnp.asarray(c_np.astype(np.float32), dtype=w_dtype)

    rep = H_out // H if (H_out % H == 0 and H_out >= H) else 0
    if rep >= 1 and np.array_equal(row_src, np.repeat(np.arange(H), rep)):
        # Integer H scale: replication folded into the output layout; the
        # reshape (NC*H, rep*W_out) -> (N, C, H_out, W_out) is contiguous/free.
        x2 = xw.reshape(NC * H, W)
        out2 = _run_wselect(x2, c_mat, rep, w_dtype)
    else:
        # TODO(synk): non-integer / downscaling H factor: rows are gathered
        # once with a static-index take outside the kernel; could be moved
        # in-kernel with PrefetchScalarGridSpec + per-block row tables.
        x3 = xw.reshape(NC, H, W)
        xg = jnp.take(x3, jnp.asarray(row_src, dtype=jnp.int32), axis=1)
        x2 = xg.reshape(NC * H_out, W)
        out2 = _run_wselect(x2, c_mat, 1, w_dtype)

    out = out2.reshape(N, C, H_out, W_out)
    return out.astype(orig_dtype)


class Upsample:
    """JAX/Pallas port of the PyTorch Upsample module (nearest only)."""

    def __init__(self, scale_factor, mode="nearest"):
        assert mode == "nearest", "only 'nearest' mode implemented"
        # TODO(synk): other interpolation modes (bilinear, etc.) not implemented.
        self.scale_factor = scale_factor
        self.mode = mode

    def __call__(self, x):
        return upsample_nearest(x, self.scale_factor)


if __name__ == "__main__":
    key = jax.random.PRNGKey(0)
    N, C, H, W = 2, 4, 16, 16
    x = jax.random.normal(key, (N, C, H, W), dtype=jnp.float32)

    # Integer scale (main path: replication folded into the output layout).
    model = Upsample(scale_factor=2, mode="nearest")
    y = jax.block_until_ready(model(x))
    ref = jnp.repeat(jnp.repeat(x, 2, axis=2), 2, axis=3)
    assert y.shape == (N, C, 2 * H, 2 * W), y.shape
    assert jnp.array_equal(y, ref), "mismatch vs nearest-neighbor reference"

    # Non-integer scale (general path: host row gather + same W-select kernel).
    y2 = jax.block_until_ready(Upsample(scale_factor=1.5)(x))
    rs = _nearest_source_indices(H, int(math.floor(H * 1.5)), 1.5)
    cs = _nearest_source_indices(W, int(math.floor(W * 1.5)), 1.5)
    ref2 = x[:, :, jnp.asarray(rs), :][:, :, :, jnp.asarray(cs)]
    assert y2.shape == ref2.shape, (y2.shape, ref2.shape)
    assert jnp.array_equal(y2, ref2), "mismatch vs non-integer nearest reference"

    print("KERNEL_OK")
</pallas_src>

<mosaic_0001>
module attributes {stable_mosaic.version = 11 : i64} {
  func.func @_wselect_kernel(%arg0: i32, %arg1: memref<64x16xf32, #tpu.memory_space<vmem>>, %arg2: memref<16x32xf32, #tpu.memory_space<vmem>>, %arg3: memref<64x64xf32, #tpu.memory_space<vmem>>) attributes {dimension_semantics = [#tpu.dimension_semantics<parallel>], iteration_bounds = array<i64: 2>, scalar_prefetch = 0 : i64, scratch_operands = 0 : i64, tpu.core_type = #tpu.core_type<tc>, window_params = [{transform_indices = @transform_0, window_bounds = array<i64: 64, 16>}, {pipeline_mode = #tpu.pipeline_mode<synchronous>, transform_indices = @transform_1, window_bounds = array<i64: 16, 32>}, {transform_indices = @transform_2, window_bounds = array<i64: 64, 64>}]} {
    %c0 = arith.constant 0 : index
    %c0_0 = arith.constant 0 : index
    %0 = vector.load %arg1[%c0, %c0_0] : memref<64x16xf32, #tpu.memory_space<vmem>>, vector<64x16xf32>
    %c0_1 = arith.constant 0 : index
    %c0_2 = arith.constant 0 : index
    %1 = vector.load %arg2[%c0_1, %c0_2] : memref<16x32xf32, #tpu.memory_space<vmem>>, vector<16x32xf32>
    %cst = arith.constant dense<0.000000e+00> : vector<64x32xf32>
    %2 = tpu.matmul %0, %1, %cst {dimension_numbers = #tpu.dot_dimension_numbers<[1], [0], [0], [1], [0, 0, 1, 1], [], []>} : vector<64x16xf32>, vector<16x32xf32>, vector<64x32xf32> -> vector<64x32xf32>
    %3 = tpu.concatenate %2, %2 in 1 : vector<64x32xf32>, vector<64x32xf32> -> vector<64x64xf32>
    %c0_3 = arith.constant 0 : index
    %c0_4 = arith.constant 0 : index
    %4 = vector.load %arg3[%c0_3, %c0_4] : memref<64x64xf32, #tpu.memory_space<vmem>>, vector<64x64xf32>
    tpu.vector_store %arg3[%c0_3, %c0_4], %3 {strides = array<i32>} : memref<64x64xf32, #tpu.memory_space<vmem>>, vector<64x64xf32>,
    return
  }
  func.func @transform_0(%arg0: i32) -> (i32, i32) {
    %c0_i32 = arith.constant 0 : i32
    %c0_i32_0 = arith.constant 0 : i32
    return %arg0, %c0_i32 : i32, i32
  }
  func.func @transform_1(%arg0: i32) -> (i32, i32) {
    %c0_i32 = arith.constant 0 : i32
    %c0_i32_0 = arith.constant 0 : i32
    %c0_i32_1 = arith.constant 0 : i32
    return %c0_i32, %c0_i32_0 : i32, i32
  }
  func.func @transform_2(%arg0: i32) -> (i32, i32) {
    %c0_i32 = arith.constant 0 : i32
    %c0_i32_0 = arith.constant 0 : i32
    return %arg0, %c0_i32 : i32, i32
  }
}

</mosaic_0001>

<llo_original>
// kernel: tpu_custom_call.1
$region0: #{tpu_custom_call.1}
  #allocation0 [shape = 'u32[]', space=smem, size = 0x4, offset = 0x4, fixed_abs, tag = 'smem constant byte address 0x4 - core index']
  #allocation1 [shape = 'u32[72,128]{1,0:T(1,128)}', space=vmem, size = 0x9000, scoped, tag = 'internal scratch']
  %s0 = inlined_call_operand.vmem [shape: f32[128,16], index: 0, kind: input, shape index: {}]
  %s1 = inlined_call_operand.vmem [shape: f32[16,32], index: 1, kind: input, shape index: {}]
  %s2 = inlined_call_operand.vmem [shape: f32[128,64], index: 2, kind: output, shape index: {}]
  %s3 = sld [smem:[#allocation0]]
  $region41: #{tpu_custom_call.1} parent=0
    _
  %s5 = ssub.s32 1, %s3
  %s6 = scalar_select 0, %s5, %s3
  loop: start=0, step=1, limit=4
  $region2: #{tpu_custom_call.1} parent=0 // loop_pre_header
    _
  $region3: #{tpu_custom_call.1} parent=0 // loop_header
    %s8 = sphi 0, %s12
    %p9 = scmp.ge.s32.totalorder %s8, 4
    %s18 = sphi 0, %s20
    %s21 = sphi 0, %s18
    %s22 = sphi 0, %s21
    %s38 = sphi 0, %s22
    %s42 = sphi 0, %s42
    %s44 = sphi 0, %s42
    %s45 = sphi 0, %s44
    %s59 = sphi 0, %s45
    %s65 = sphi 0, %s67
    %s68 = sphi 0, %s65
    %s69 = sphi 0, %s68
    %s85 = sphi 0, %s69
  $region4: #{tpu_custom_call.1} parent=0 // loop_header_branch
    %11 = sbr.rel (%p9) target = $region8
  $region5: #{tpu_custom_call.1} parent=0 // loop_body
    %s13 = ssub.s32 %s8, 1
    %s14 = ssub.s32 %s8, 2
    %s15 = sadd.s32 %s8, 1
    %s16 = ssub.s32 %s8, %s15
    %p17 = scmp.eq.s32.totalorder %s16, 0
    %s19 = sadd.s32 %s18, 1
    %s20 = scalar_select %p17, %s18, %s19
    %p23 = pneg %p17
    %p24 = scmp.eq.s32.totalorder %s8, 1
    %p25 = por %p23, %p24
    %p26 = scmp.ne.s32.totalorder %s18, %s21
    %p27 = scmp.eq.s32.totalorder %s8, 0
    %p28 = por %p26, %p27
    %p29 = scmp.ne.s32.totalorder %s18, %s21
    %p30 = scmp.eq.s32.totalorder %s13, 1
    %p31 = por %p29, %p30
    %p32 = scmp.ne.s32.totalorder %s21, %s22
    %p33 = scmp.eq.s32.totalorder %s13, 0
    %p34 = por %p32, %p33
    %p35 = scmp.ne.s32.totalorder %s21, %s22
    %p36 = scmp.eq.s32.totalorder %s14, 1
    %p37 = por %p35, %p36
    %p39 = scmp.ne.s32.totalorder %s22, %s38
    %p40 = scmp.eq.s32.totalorder %s14, 0
    %p41 = por %p39, %p40
    %s43 = sadd.s32 %s42, 1
    %p46 = scmp.eq.s32.totalorder %s8, 1
    %p47 = scmp.ne.s32.totalorder %s42, %s44
    %p48 = scmp.eq.s32.totalorder %s8, 0
    %p49 = por %p47, %p48
    %p50 = scmp.ne.s32.totalorder %s42, %s44
    %p51 = scmp.eq.s32.totalorder %s13, 1
    %p52 = por %p50, %p51
    %p53 = scmp.ne.s32.totalorder %s44, %s45
    %p54 = scmp.eq.s32.totalorder %s13, 0
    %p55 = por %p53, %p54
    %p56 = scmp.ne.s32.totalorder %s44, %s45
    %p57 = scmp.eq.s32.totalorder %s14, 1
    %p58 = por %p56, %p57
    %p60 = scmp.ne.s32.totalorder %s45, %s59
    %p61 = scmp.eq.s32.totalorder %s14, 0
    %p62 = por %p60, %p61
    %s63 = ssub.s32 %s8, %s15
    %p64 = scmp.eq.s32.totalorder %s63, 0
    %s66 = sadd.s32 %s65, 1
    %s67 = scalar_select %p64, %s65, %s66
    %p70 = pneg %p64
    %p71 = scmp.eq.s32.totalorder %s8, 1
    %p72 = por %p70, %p71
    %p73 = scmp.ne.s32.totalorder %s65, %s68
    %p74 = scmp.eq.s32.totalorder %s8, 0
    %p75 = por %p73, %p74
    %p76 = scmp.ne.s32.totalorder %s65, %s68
    %p77 = scmp.eq.s32.totalorder %s13, 1
    %p78 = por %p76, %p77
    %p79 = scmp.ne.s32.totalorder %s68, %s69
    %p80 = scmp.eq.s32.totalorder %s13, 0
    %p81 = por %p79, %p80
    %p82 = scmp.ne.s32.totalorder %s68, %s69
    %p83 = scmp.eq.s32.totalorder %s14, 1
    %p84 = por %p82, %p83
    %p86 = scmp.ne.s32.totalorder %s69, %s85
    %p87 = scmp.eq.s32.totalorder %s14, 0
    %p88 = por %p86, %p87
    %p89 = scmp.le.s32.totalorder 1, %s8
    %p90 = scmp.lt.s32.totalorder %s8, 3
    %p91 = pnand %p89, %p90
    %p92 = pneg %p91
    // Predicated region
    $region9: #{tpu_custom_call.1} parent=5 // pred_check
      _
    $region10: #{tpu_custom_call.1} parent=5 // pred_check_branch
      %94 = sbr.rel (%p91) target = $region12
    $region11: #{tpu_custom_call.1} parent=5 // pred_region
      %s95 = ssub.s32 %s8, 1
      // Predicated region
      $region13: #{tpu_custom_call.1} parent=11 // pred_check
        %p96 = pneg %p55
      $region14: #{tpu_custom_call.1} parent=11 // pred_check_branch
        %98 = sbr.rel (%p96) target = $region16
      $region15: #{tpu_custom_call.1} parent=11 // pred_region
        _
      $region16: #{tpu_custom_call.1} parent=11 // pred_fallthru
        _
    $region12: #{tpu_custom_call.1} parent=5 // pred_fallthru
      _
    %p99 = scmp.lt.s32.totalorder %s8, 2
    // Predicated region
    $region17: #{tpu_custom_call.1} parent=5 // pred_check
      %p100 = pneg %p99
    $region18: #{tpu_custom_call.1} parent=5 // pred_check_branch
      %102 = sbr.rel (%p100) target = $region20
    $region19: #{tpu_custom_call.1} parent=5 // pred_region
      // Predicated region
      $region21: #{tpu_custom_call.1} parent=19 // pred_check
        %p103 = pneg %p28
      $region22: #{tpu_custom_call.1} parent=19 // pred_check_branch
        %105 = sbr.rel (%p103) target = $region24
      $region23: #{tpu_custom_call.1} parent=19 // pred_region
        %s106 = smul.u32 8, %s8
        %p107 = scmp.lt.s32.totalorder %s106, 15
        %s108 = scalar_select %p107, %s106, 15
        %s109 = smul.addr %s108, 8
        %s110 = scalar_lea.vmem %s0, %s109
        %s111 = smul.u32 8, %s8
      $region24: #{tpu_custom_call.1} parent=19 // pred_fallthru
        _
    $region20: #{tpu_custom_call.1} parent=5 // pred_fallthru
      _
    %p112 = scmp.le.s32.totalorder 1, %s8
    %p113 = scmp.lt.s32.totalorder %s8, 3
    %p114 = pnand %p112, %p113
    %p115 = pneg %p114
    // Predicated region
    $region25: #{tpu_custom_call.1} parent=5 // pred_check
      _
    $region26: #{tpu_custom_call.1} parent=5 // pred_check_branch
      %117 = sbr.rel (%p114) target = $region28
    $region27: #{tpu_custom_call.1} parent=5 // pred_region
      %s118 = ssub.s32 %s8, 1
      %s119 = smul.u32 8, %s13
      %p120 = scmp.lt.s32.totalorder %s119, 15
      %s121 = scalar_select %p120, %s119, 15
      %s122 = smul.addr %s121, 8
      %s123 = scalar_lea.vmem %s0, %s122
      %p124 = pneg %p34
      %p125 = pneg %p31
      %p126 = pneg %p55
      %p127 = pneg %p52
      %p128 = pneg %p81
      %p129 = pneg %p78
      %s130 = smul.u32 8, %s13
      %p131 = scmp.lt.s32.totalorder %s130, 15
      %s132 = scalar_select %p131, %s130, 15
      %s133 = smul.addr %s132, 8
      %s134 = scalar_lea.vmem %s2, %s133
      %s135 = smul.u32 8, %s13
      %p136 = scmp.lt.s32.totalorder %s135, 15
      %s137 = scalar_select %p136, %s135, 15
      %s138 = smul.addr %s137, 8
      %s139 = scalar_lea.vmem %s0, %s138
      %s140 = smul.u32 8, %s13
      %s141 = smul.u32 8, %s13
      %p142 = scmp.lt.s32.totalorder %s141, 15
      %s143 = scalar_select %p142, %s141, 15
      %s144 = smul.addr %s143, 8
      %s145 = scalar_lea.vmem %s2, %s144
      %s146 = smul.u32 8, %s13
      %v147 = vld [vmem:[%s139] sm:$0xff]
      %v148 = vld [vmem:[%s139 + $0x8] sm:$0xff]
      %v149 = vld [vmem:[%s139 + $0x10] sm:$0xff]
      %v150 = vld [vmem:[%s139 + $0x18] sm:$0xff]
      %v151 = vld [vmem:[%s139 + $0x20] sm:$0xff]
      %v152 = vld [vmem:[%s139 + $0x28] sm:$0xff]
      %v153 = vld [vmem:[%s139 + $0x30] sm:$0xff]
      %v154 = vld [vmem:[%s139 + $0x38] sm:$0xff]
      %v155 = vld [vmem:[%s1] sm:$0xff]
      %v156 = vld [vmem:[%s1 + $0x8] sm:$0xff]
      %vm157 = vcmask 130048
      %v159 = vsel %vm157, %v147, 0
      %v162 = vsel %vm157, %v148, 0
      %v165 = vsel %vm157, %v149, 0
      %v168 = vsel %vm157, %v150, 0
      %v171 = vsel %vm157, %v151, 0
      %v174 = vsel %vm157, %v152, 0
      %v177 = vsel %vm157, %v153, 0
      %v180 = vsel %vm157, %v154, 0
      %182 = vmatpush.msra.mxu0 0.0
      %183 = vmatpush.msra.mxu0 0.0
      %184 = vmatpush.msra.mxu0 0.0
      %185 = vmatpush.msra.mxu0 0.0
      %186 = vmatpush.msra.mxu0 0.0
      %187 = vmatpush.msra.mxu0 0.0
      %188 = vmatpush.msra.mxu0 0.0
      %189 = vmatpush.msra.mxu0 0.0
      %190 = vmatpush.msra.mxu0 0.0
      %191 = vmatpush.msra.mxu0 0.0
      %192 = vmatpush.msra.mxu0 0.0
      %193 = vmatpush.msra.mxu0 0.0
      %194 = vmatpush.msra.mxu0 0.0
      %195 = vmatpush.msra.mxu0 0.0
      %196 = vmatpush.msra.mxu0 %v156
      %197 = vmatpush.msra.mxu0 %v155
      %198 = vmatmul.f32.gmra.mxu0 %v159
      %v199 = vpop.f32.mrf.mxu0
      %v200 = vadd.f32 0.0, %v199
      %201 = vmatmul.f32.gmra.mxu0 %v162
      %v202 = vpop.f32.mrf.mxu0
      %v203 = vadd.f32 0.0, %v202
      %204 = vmatmul.f32.gmra.mxu0 %v165
      %v205 = vpop.f32.mrf.mxu0
      %v206 = vadd.f32 0.0, %v205
      %207 = vmatmul.f32.gmra.mxu0 %v168
      %v208 = vpop.f32.mrf.mxu0
      %v209 = vadd.f32 0.0, %v208
      %210 = vmatmul.f32.gmra.mxu0 %v171
      %v211 = vpop.f32.mrf.mxu0
      %v212 = vadd.f32 0.0, %v211
      %213 = vmatmul.f32.gmra.mxu0 %v174
      %v214 = vpop.f32.mrf.mxu0
      %v215 = vadd.f32 0.0, %v214
      %216 = vmatmul.f32.gmra.mxu0 %v177
      %v217 = vpop.f32.mrf.mxu0
      %v218 = vadd.f32 0.0, %v217
      %219 = vmatmul.f32.gmra.mxu0 %v180
      %v220 = vpop.f32.mrf.mxu0
      %v221 = vadd.f32 0.0, %v220
      %222 = vdwg.mxu0
      %231 = vrot.lane.b32.xlu0 %v200, 32
      %v232 = vpop.permute.xlu0 %231
      %233 = vrot.lane.b32.xlu0 %v203, 32
      %v234 = vpop.permute.xlu0 %233
      %235 = vrot.lane.b32.xlu0 %v206, 32
      %v236 = vpop.permute.xlu0 %235
      %237 = vrot.lane.b32.xlu0 %v209, 32
      %v238 = vpop.permute.xlu0 %237
      %239 = vrot.lane.b32.xlu0 %v212, 32
      %v240 = vpop.permute.xlu0 %239
      %241 = vrot.lane.b32.xlu0 %v215, 32
      %v242 = vpop.permute.xlu0 %241
      %243 = vrot.lane.b32.xlu0 %v218, 32
      %v244 = vpop.permute.xlu0 %243
      %245 = vrot.lane.b32.xlu0 %v221, 32
      %v246 = vpop.permute.xlu0 %245
      %vm255 = vcmask 261120
      %v256 = vsel %vm255, %v200, %v232
      %v257 = vsel %vm255, %v203, %v234
      %v258 = vsel %vm255, %v206, %v236
      %v259 = vsel %vm255, %v209, %v238
      %v260 = vsel %vm255, %v212, %v240
      %v261 = vsel %vm255, %v215, %v242
      %v262 = vsel %vm255, %v218, %v244
      %v263 = vsel %vm255, %v221, %v246
      %vm264 = vcmask 523264
      %265 = vst.msk [vmem:[%s145] sm:$0xff] %vm264, %v256
      %266 = vst.msk [vmem:[%s145 + $0x8] sm:$0xff] %vm264, %v257
      %267 = vst.msk [vmem:[%s145 + $0x10] sm:$0xff] %vm264, %v258
      %268 = vst.msk [vmem:[%s145 + $0x18] sm:$0xff] %vm264, %v259
      %269 = vst.msk [vmem:[%s145 + $0x20] sm:$0xff] %vm264, %v260
      %270 = vst.msk [vmem:[%s145 + $0x28] sm:$0xff] %vm264, %v261
      %271 = vst.msk [vmem:[%s145 + $0x30] sm:$0xff] %vm264, %v262
      %272 = vst.msk [vmem:[%s145 + $0x38] sm:$0xff] %vm264, %v263
      %s273 = smul.u32 8, %s13
      %p274 = scmp.lt.s32.totalorder %s273, 15
      %s275 = scalar_select %p274, %s273, 15
      %s276 = smul.addr %s275, 8
      %s277 = scalar_lea.vmem %s2, %s276
      // Predicated region
      $region29: #{tpu_custom_call.1} parent=27 // pred_check
        %p278 = pneg %p78
      $region30: #{tpu_custom_call.1} parent=27 // pred_check_branch
        %280 = sbr.rel (%p278) target = $region32
      $region31: #{tpu_custom_call.1} parent=27 // pred_region
        %s281 = smul.u32 8, %s13
      $region32: #{tpu_custom_call.1} parent=27 // pred_fallthru
        _
    $region28: #{tpu_custom_call.1} parent=5 // pred_fallthru
      _
    %p282 = scmp.le.s32.totalorder 2, %s8
    // Predicated region
    $region33: #{tpu_custom_call.1} parent=5 // pred_check
      %p283 = pneg %p282
    $region34: #{tpu_custom_call.1} parent=5 // pred_check_branch
      %285 = sbr.rel (%p283) target = $region36
    $region35: #{tpu_custom_call.1} parent=5 // pred_region
      %s286 = ssub.s32 %s8, 2
      // Predicated region
      $region37: #{tpu_custom_call.1} parent=35 // pred_check
        %p287 = pneg %p84
      $region38: #{tpu_custom_call.1} parent=35 // pred_check_branch
        %289 = sbr.rel (%p287) target = $region40
      $region39: #{tpu_custom_call.1} parent=35 // pred_region
        %s290 = smul.u32 8, %s14
        %p291 = scmp.lt.s32.totalorder %s290, 15
        %s292 = scalar_select %p291, %s290, 15
        %s293 = smul.addr %s292, 8
        %s294 = scalar_lea.vmem %s2, %s293
      $region40: #{tpu_custom_call.1} parent=35 // pred_fallthru
        _
    $region36: #{tpu_custom_call.1} parent=5 // pred_fallthru
      _
  $region6: #{tpu_custom_call.1} parent=0 // loop_footer
    %s12 = sadd.s32 1, %s8
  $region7: #{tpu_custom_call.1} parent=0 // loop_footer_branch
    %7 = sbr.rel target = $region3
  $region8: #{tpu_custom_call.1} parent=0 // loop_exit
    _

</llo_original>
